<compile_context>
chip_gen: v6e
topology: v6e:2x2x1
jax: 0.10.0
libtpu: 0.0.40
codegen_flags: <defaults>
</compile_context>

<pallas_src>
import jax
import jax.numpy as jnp
from jax.experimental import pallas as pl
from jax.experimental.pallas import tpu as pltpu

EPS = 1e-5


# --------------------------------------------------------------------------- #
# Tiling / VMEM sizing
# --------------------------------------------------------------------------- #
def _vmem_budget_bytes():
    """Scoped-VMEM budget: ~3/4 of physical VMEM, capped at 96 MiB.

    v5e/v6e -> 96 MiB, v7x (64 MiB physical) -> 48 MiB, leaving DMA headroom.
    """
    cap = 64 * 1024 * 1024
    try:
        info = pltpu.get_tpu_info()
        cap = int(getattr(info, "vmem_capacity_bytes", cap))
    except Exception:
        pass
    return min((cap * 3) // 4, 96 * 1024 * 1024)


def _aligned_divisors_desc(dim, cap):
    """128-aligned divisors of `dim` that are <= cap, descending."""
    out = []
    t = (min(dim, cap) // 128) * 128
    while t >= 128:
        if dim % t == 0:
            out.append(t)
        t -= 128
    return out


def _select_tiles(N, K, M, in_itemsize, out_itemsize, budget):
    """Pick (tn, tk). Prefer whole-K (no accumulator loop); shrink tk before tn."""

    def vmem_use(tn, tk):
        x_b = 2 * N * tk * in_itemsize           # double-buffered x tile
        w_b = 2 * tk * tn * in_itemsize          # streamed weight tile
        o_b = 2 * N * tn * out_itemsize          # output tile
        acc_b = N * tn * 4 if tk < K else 0      # f32 accumulator scratch
        bn_b = 4 * tn * 4                        # gamma/beta
        return x_b + w_b + o_b + acc_b + bn_b

    # Feature-tile candidates: prefer M//2 (two even tiles -> v7x megacore),
    # then large 128-aligned divisors, finally the full dim (small M).
    tn_cands = []
    if M % 256 == 0:
        tn_cands.append(M // 2)
    for t in _aligned_divisors_desc(M, 1024):
        if t not in tn_cands:
            tn_cands.append(t)
    if M not in tn_cands:
        tn_cands.append(M)

    for tn in tn_cands:
        if vmem_use(tn, K) <= budget:            # whole-K: single matmul per tile
            return tn, K
        for tk in _aligned_divisors_desc(K, 2048):   # shrink tk before tn
            if vmem_use(tn, tk) <= budget:
                return tn, tk
    # TODO(synk): for very large batch (N*tn f32 approaching VMEM) add a
    # batch-tiled two-pass BN (sum / sum-of-squares accumulation over an
    # 'arbitrary' batch grid axis) instead of falling through here.
    return tn_cands[-1], K


# --------------------------------------------------------------------------- #
# Kernels
# --------------------------------------------------------------------------- #
def _make_kernel(apply_relu, affine, k_tiled):
    """Fused Linear + training-mode BatchNorm1d (+ ReLU) kernel."""

    def finalize(h, g_ref, be_ref, o_ref):
        # BatchNorm1d training mode: biased variance over the batch dimension,
        # single pass (E[x^2] - E[x]^2) in f32, affine folded into scale/shift.
        mean = jnp.mean(h, axis=0, keepdims=True)
        var = jnp.mean(h * h, axis=0, keepdims=True) - mean * mean
        var = jnp.maximum(var, 0.0)              # guard against cancellation
        scale = jax.lax.rsqrt(var + EPS)         # EUP
        if g_ref is not None:
            scale = scale * g_ref[...]
            shift = be_ref[...] - mean * scale
        else:
            shift = -mean * scale
        out = h * scale + shift
        if apply_relu:
            out = jnp.maximum(out, 0.0)
        o_ref[...] = out.astype(o_ref.dtype)

    if not k_tiled:
        # Whole-K tile: one matmul, no accumulator scratch, 1-D grid.
        if affine:
            def kernel(x_ref, w_ref, g_ref, be_ref, o_ref):
                h = jnp.dot(x_ref[...], w_ref[...],
                            preferred_element_type=jnp.float32)
                finalize(h, g_ref, be_ref, o_ref)
        else:
            def kernel(x_ref, w_ref, o_ref):
                h = jnp.dot(x_ref[...], w_ref[...],
                            preferred_element_type=jnp.float32)
                finalize(h, None, None, o_ref)
        return kernel

    # K-tiled fallback (only used when the whole-K tile would not fit VMEM).
    def body(x_ref, w_ref, o_ref, acc_ref, g_ref, be_ref):
        k = pl.program_id(1)
        part = jnp.dot(x_ref[...], w_ref[...],
                       preferred_element_type=jnp.float32)

        @pl.when(k == 0)
        def _():
            acc_ref[...] = part                  # direct store, no zero-init pass

        @pl.when(k > 0)
        def _():
            acc_ref[...] += part

        @pl.when(k == pl.num_programs(1) - 1)
        def _():
            finalize(acc_ref[...], g_ref, be_ref, o_ref)

    if affine:
        def kernel(x_ref, w_ref, g_ref, be_ref, o_ref, acc_ref):
            body(x_ref, w_ref, o_ref, acc_ref, g_ref, be_ref)
    else:
        def kernel(x_ref, w_ref, o_ref, acc_ref):
            body(x_ref, w_ref, o_ref, acc_ref, None, None)
    return kernel


# --------------------------------------------------------------------------- #
# Layer wrapper
# --------------------------------------------------------------------------- #
def _fused_linear_bn(x, w, gamma=None, beta=None, *, relu,
                     compute_dtype=jnp.bfloat16, out_dtype=jnp.float32):
    """One fused layer: (x @ w) -> BatchNorm1d(training) [-> ReLU]."""
    N, K = x.shape
    Kw, M = w.shape
    assert K == Kw
    affine = gamma is not None

    in_itemsize = jnp.dtype(compute_dtype).itemsize
    out_itemsize = jnp.dtype(out_dtype).itemsize
    budget = _vmem_budget_bytes()
    tn, tk = _select_tiles(N, K, M, in_itemsize, out_itemsize, budget)
    k_tiled = tk < K

    # No-op when caller already supplies compute-dtype tensors (pre-cast weights,
    # bf16 activations from the previous layer).
    x_c = x if x.dtype == compute_dtype else x.astype(compute_dtype)
    w_c = w if w.dtype == compute_dtype else w.astype(compute_dtype)

    if k_tiled:
        grid = (M // tn, K // tk)
        x_spec = pl.BlockSpec((N, tk), lambda j, k: (0, k))
        w_spec = pl.BlockSpec((tk, tn), lambda j, k: (k, j))
        bn_spec = pl.BlockSpec((1, tn), lambda j, k: (0, j))
        out_spec = pl.BlockSpec((N, tn), lambda j, k: (0, j))
        scratch = [pltpu.VMEM((N, tn), jnp.float32)]
        dims = ("parallel", "arbitrary")
    else:
        grid = (M // tn,)
        x_spec = pl.BlockSpec((N, K), lambda j: (0, 0))    # resident: fetched once
        w_spec = pl.BlockSpec((K, tn), lambda j: (0, j))   # streamed weight tile
        bn_spec = pl.BlockSpec((1, tn), lambda j: (0, j))
        out_spec = pl.BlockSpec((N, tn), lambda j: (0, j))
        scratch = []
        dims = ("parallel",)

    in_specs = [x_spec, w_spec]
    args = [x_c, w_c]
    if affine:
        in_specs += [bn_spec, bn_spec]
        args += [gamma, beta]

    bytes_accessed = (
        x_c.size * x_c.dtype.itemsize
        + w_c.size * w_c.dtype.itemsize
        + N * M * out_itemsize
        + (2 * M * 4 if affine else 0)
    )
    cost = pl.CostEstimate(
        flops=2 * N * K * M,
        transcendentals=M,                       # one rsqrt per output feature
        bytes_accessed=bytes_accessed,
    )

    return pl.pallas_call(
        _make_kernel(relu, affine, k_tiled),
        out_shape=jax.ShapeDtypeStruct((N, M), out_dtype),
        grid_spec=pltpu.PrefetchScalarGridSpec(
            num_scalar_prefetch=0,
            grid=grid,
            in_specs=in_specs,
            out_specs=out_spec,
            scratch_shapes=scratch,
        ),
        compiler_params=pltpu.CompilerParams(
            # Feature tiles are independent (per-feature BN stats) -> megacore
            # split on v7x; K (if tiled) is a reduction -> arbitrary.
            dimension_semantics=dims,
            vmem_limit_bytes=budget,
        ),
        cost_estimate=cost,
    )(*args)


# --------------------------------------------------------------------------- #
# Model
# --------------------------------------------------------------------------- #
def projection_mlp(x, params, num_layers=3, compute_dtype=jnp.bfloat16):
    """SimSiam projection_MLP forward (training-mode BatchNorm).

    Linear biases (b1/b2/b3) are intentionally not consumed: training-mode BN
    immediately after each Linear cancels them exactly.  Layers 1/2 emit
    activations in `compute_dtype` straight from the kernel; the final layer
    emits f32.
    """
    assert num_layers in (2, 3)
    h = _fused_linear_bn(x, params["w1"], params["g1"], params["be1"],
                         relu=True, compute_dtype=compute_dtype,
                         out_dtype=compute_dtype)
    if num_layers == 3:
        h = _fused_linear_bn(h, params["w2"], params["g2"], params["be2"],
                             relu=True, compute_dtype=compute_dtype,
                             out_dtype=compute_dtype)
    return _fused_linear_bn(h, params["w3"], relu=False,
                            compute_dtype=compute_dtype,
                            out_dtype=jnp.float32)


def init_params(key, in_dim, out_dim):
    hidden_dim = out_dim
    ks = jax.random.split(key, 6)

    def linear_init(kw, kb, fan_in, fan_out):
        # PyTorch nn.Linear default init: U(-1/sqrt(fan_in), 1/sqrt(fan_in))
        bound = 1.0 / (fan_in ** 0.5)
        w = jax.random.uniform(kw, (fan_in, fan_out), jnp.float32, -bound, bound)
        b = jax.random.uniform(kb, (1, fan_out), jnp.float32, -bound, bound)
        return w, b

    w1, b1 = linear_init(ks[0], ks[1], in_dim, hidden_dim)
    w2, b2 = linear_init(ks[2], ks[3], hidden_dim, hidden_dim)
    w3, b3 = linear_init(ks[4], ks[5], hidden_dim, out_dim)
    return {
        "w1": w1, "b1": b1,
        "g1": jnp.ones((1, hidden_dim), jnp.float32),
        "be1": jnp.zeros((1, hidden_dim), jnp.float32),
        "w2": w2, "b2": b2,
        "g2": jnp.ones((1, hidden_dim), jnp.float32),
        "be2": jnp.zeros((1, hidden_dim), jnp.float32),
        "w3": w3, "b3": b3,
    }


def prepare_params(params, compute_dtype=jnp.bfloat16):
    """Pre-cast weight matrices once (init / param-update time) so the forward
    pass never pays a per-call f32->bf16 convert over HBM.  BN params stay f32."""
    out = dict(params)
    for k in ("w1", "w2", "w3"):
        if k in out:
            out[k] = out[k].astype(compute_dtype)
    return out


# --------------------------------------------------------------------------- #
# Pure-JAX reference (faithful to the PyTorch module)
# --------------------------------------------------------------------------- #
def _batchnorm_ref(h, gamma=None, beta=None):
    mean = jnp.mean(h, axis=0, keepdims=True)
    var = jnp.mean((h - mean) * (h - mean), axis=0, keepdims=True)
    hn = (h - mean) * jax.lax.rsqrt(var + EPS)
    if gamma is not None:
        hn = hn * gamma + beta
    return hn


def reference_mlp(x, p):
    # Biases included; training-mode BN cancels them exactly.
    h = x @ p["w1"] + p["b1"]
    h = jnp.maximum(_batchnorm_ref(h, p["g1"], p["be1"]), 0.0)
    h = h @ p["w2"] + p["b2"]
    h = jnp.maximum(_batchnorm_ref(h, p["g2"], p["be2"]), 0.0)
    h = h @ p["w3"] + p["b3"]
    return _batchnorm_ref(h)


if __name__ == "__main__":
    key = jax.random.PRNGKey(0)
    k_x, k_p = jax.random.split(key)

    # NOTE: toy smoke-test shapes (32-wide features => lane-masked stores, idle
    # MXU).  Real SimSiam dims (batch 512, 2048-wide) are where the whole-K
    # tiles / bf16 activations / pre-cast weights pay off.
    N, in_dim, out_dim = 8, 32, 32
    x = jax.random.normal(k_x, (N, in_dim), jnp.float32)
    params = init_params(k_p, in_dim, out_dim)

    ref = reference_mlp(x, params)

    # f32 compute path: tight numerical check vs the PyTorch-faithful reference
    # (bias-with-BN and bias-free-with-BN are mathematically identical).
    out_f32 = jax.block_until_ready(
        projection_mlp(x, params, compute_dtype=jnp.float32))
    assert out_f32.shape == (N, out_dim)
    assert jnp.allclose(out_f32, ref, atol=1e-4, rtol=1e-4), \
        "f32 kernel mismatch vs pure-JAX reference"

    # Default bf16-MXU path with pre-cast weights and bf16 intermediate
    # activations (f32 accumulation / f32 BN stats inside the kernel).
    bf16_params = prepare_params(params, jnp.bfloat16)
    out_bf16 = jax.block_until_ready(
        projection_mlp(x, bf16_params, compute_dtype=jnp.bfloat16))
    assert out_bf16.shape == (N, out_dim)
    assert bool(jnp.all(jnp.isfinite(out_bf16)))
    assert jnp.allclose(out_bf16, ref, atol=1e-1, rtol=1e-2), \
        "bf16 kernel drifted too far from f32 reference"

    print("KERNEL_OK")
</pallas_src>

<mosaic_0001>
module attributes {stable_mosaic.version = 11 : i64} {
  func.func @kernel(%arg0: i32, %arg1: memref<8x32xf32, #tpu.memory_space<vmem>>, %arg2: memref<32x32xf32, #tpu.memory_space<vmem>>, %arg3: memref<1x32xf32, #tpu.memory_space<vmem>>, %arg4: memref<1x32xf32, #tpu.memory_space<vmem>>, %arg5: memref<8x32xf32, #tpu.memory_space<vmem>>) attributes {dimension_semantics = [#tpu.dimension_semantics<parallel>], iteration_bounds = array<i64: 1>, scalar_prefetch = 0 : i64, scratch_operands = 0 : i64, tpu.core_type = #tpu.core_type<tc>, window_params = [{pipeline_mode = #tpu.pipeline_mode<synchronous>, transform_indices = @transform_0, window_bounds = array<i64: 8, 32>}, {transform_indices = @transform_1, window_bounds = array<i64: 32, 32>}, {transform_indices = @transform_2, window_bounds = array<i64: 1, 32>}, {transform_indices = @transform_3, window_bounds = array<i64: 1, 32>}, {transform_indices = @transform_4, window_bounds = array<i64: 8, 32>}]} {
    %c0 = arith.constant 0 : index
    %c0_0 = arith.constant 0 : index
    %0 = vector.load %arg1[%c0, %c0_0] : memref<8x32xf32, #tpu.memory_space<vmem>>, vector<8x32xf32>
    %c0_1 = arith.constant 0 : index
    %c0_2 = arith.constant 0 : index
    %1 = vector.load %arg2[%c0_1, %c0_2] : memref<32x32xf32, #tpu.memory_space<vmem>>, vector<32x32xf32>
    %cst = arith.constant dense<0.000000e+00> : vector<8x32xf32>
    %2 = tpu.matmul %0, %1, %cst {dimension_numbers = #tpu.dot_dimension_numbers<[1], [0], [0], [1], [0, 0, 1, 1], [], []>} : vector<8x32xf32>, vector<32x32xf32>, vector<8x32xf32> -> vector<8x32xf32>
    %cst_3 = arith.constant dense<0.000000e+00> : vector<32xf32>
    %3 = vector.multi_reduction <add>, %2, %cst_3 [0] : vector<8x32xf32> to vector<32xf32>
    %4 = vector.shape_cast %3 : vector<32xf32> to vector<1x32xf32>
    %cst_4 = arith.constant 8.000000e+00 : f32
    %5 = vector.broadcast %cst_4 : f32 to vector<1x32xf32>
    %6 = arith.divf %4, %5 : vector<1x32xf32>
    %7 = arith.mulf %2, %2 : vector<8x32xf32>
    %cst_5 = arith.constant dense<0.000000e+00> : vector<32xf32>
    %8 = vector.multi_reduction <add>, %7, %cst_5 [0] : vector<8x32xf32> to vector<32xf32>
    %9 = vector.shape_cast %8 : vector<32xf32> to vector<1x32xf32>
    %cst_6 = arith.constant 8.000000e+00 : f32
    %10 = vector.broadcast %cst_6 : f32 to vector<1x32xf32>
    %11 = arith.divf %9, %10 : vector<1x32xf32>
    %12 = arith.mulf %6, %6 : vector<1x32xf32>
    %13 = arith.subf %11, %12 : vector<1x32xf32>
    %cst_7 = arith.constant 0.000000e+00 : f32
    %14 = vector.broadcast %cst_7 : f32 to vector<1x32xf32>
    %15 = arith.maximumf %13, %14 : vector<1x32xf32>
    %cst_8 = arith.constant 9.99999974E-6 : f32
    %16 = vector.broadcast %cst_8 : f32 to vector<1x32xf32>
    %17 = arith.addf %15, %16 : vector<1x32xf32>
    %18 = math.rsqrt %17 : vector<1x32xf32>
    %c0_9 = arith.constant 0 : index
    %c0_10 = arith.constant 0 : index
    %19 = vector.load %arg3[%c0_9, %c0_10] : memref<1x32xf32, #tpu.memory_space<vmem>>, vector<1x32xf32>
    %20 = arith.mulf %18, %19 : vector<1x32xf32>
    %c0_11 = arith.constant 0 : index
    %c0_12 = arith.constant 0 : index
    %21 = vector.load %arg4[%c0_11, %c0_12] : memref<1x32xf32, #tpu.memory_space<vmem>>, vector<1x32xf32>
    %22 = arith.mulf %6, %20 : vector<1x32xf32>
    %23 = arith.subf %21, %22 : vector<1x32xf32>
    %24 = vector.broadcast %20 : vector<1x32xf32> to vector<8x32xf32>
    %25 = arith.mulf %2, %24 : vector<8x32xf32>
    %26 = vector.broadcast %23 : vector<1x32xf32> to vector<8x32xf32>
    %27 = arith.addf %25, %26 : vector<8x32xf32>
    %cst_13 = arith.constant 0.000000e+00 : f32
    %28 = vector.broadcast %cst_13 : f32 to vector<8x32xf32>
    %29 = arith.maximumf %27, %28 : vector<8x32xf32>
    %c0_14 = arith.constant 0 : index
    %c0_15 = arith.constant 0 : index
    %30 = vector.load %arg5[%c0_14, %c0_15] : memref<8x32xf32, #tpu.memory_space<vmem>>, vector<8x32xf32>
    tpu.vector_store %arg5[%c0_14, %c0_15], %29 {strides = array<i32>} : memref<8x32xf32, #tpu.memory_space<vmem>>, vector<8x32xf32>,
    return
  }
  func.func @transform_0(%arg0: i32) -> (i32, i32) {
    %c0_i32 = arith.constant 0 : i32
    %c0_i32_0 = arith.constant 0 : i32
    %c0_i32_1 = arith.constant 0 : i32
    return %c0_i32, %c0_i32_0 : i32, i32
  }
  func.func @transform_1(%arg0: i32) -> (i32, i32) {
    %c0_i32 = arith.constant 0 : i32
    %c0_i32_0 = arith.constant 0 : i32
    return %c0_i32, %arg0 : i32, i32
  }
  func.func @transform_2(%arg0: i32) -> (i32, i32) {
    %c0_i32 = arith.constant 0 : i32
    %c0_i32_0 = arith.constant 0 : i32
    return %c0_i32, %arg0 : i32, i32
  }
  func.func @transform_3(%arg0: i32) -> (i32, i32) {
    %c0_i32 = arith.constant 0 : i32
    %c0_i32_0 = arith.constant 0 : i32
    return %c0_i32, %arg0 : i32, i32
  }
  func.func @transform_4(%arg0: i32) -> (i32, i32) {
    %c0_i32 = arith.constant 0 : i32
    %c0_i32_0 = arith.constant 0 : i32
    return %c0_i32, %arg0 : i32, i32
  }
}

</mosaic_0001>

<llo_original>
// kernel: tpu_custom_call.1
$region0: #{tpu_custom_call.1}
  #allocation0 [shape = 'u32[]', space=smem, size = 0x4, offset = 0x4, fixed_abs, tag = 'smem constant byte address 0x4 - core index']
  #allocation1 [shape = 'u32[144,128]{1,0:T(1,128)}', space=vmem, size = 0x12000, scoped, tag = 'internal scratch']
  %s0 = inlined_call_operand.hbm [shape: f32[8,32], index: 0, kind: input, shape index: {}]
  %s1 = inlined_call_operand.hbm [shape: f32[32,32], index: 1, kind: input, shape index: {}]
  %s2 = inlined_call_operand.vmem [shape: f32[1,32], index: 2, kind: input, shape index: {}]
  %s3 = inlined_call_operand.vmem [shape: f32[1,32], index: 3, kind: input, shape index: {}]
  %s4 = inlined_call_operand.hbm [shape: f32[8,32], index: 4, kind: output, shape index: {}]
  %s5 = sld [smem:[#allocation0]]
  $region34: #{tpu_custom_call.1} parent=0
    _
  %s7 = ssub.s32 1, %s5
  %s8 = scalar_select 0, %s7, %s5
  $region1: #{tpu_custom_call.1} parent=0
    #allocation2 [shape = 'u8[4096]{0}', space=vmem, size = 0x1000, scoped, tag = 'input window, operand 0, single buffered']
    #allocation3 [shape = 's32[1]{0}', space=sflag, size = 0x4, scoped, tag = 'scoped memory for tpu_custom_call.1']
    #allocation4 [shape = 's32[1]{0}', space=sflag, size = 0x4, scoped, tag = 'scoped memory for tpu_custom_call.1']
    #allocation5 [shape = 'u8[16384]{0}', space=vmem, size = 0x4000, scoped, tag = 'input window, operand 1, single buffered']
    #allocation6 [shape = 's32[1]{0}', space=sflag, size = 0x4, scoped, tag = 'scoped memory for tpu_custom_call.1']
    #allocation7 [shape = 'u8[4096]{0}', space=vmem, size = 0x1000, scoped, tag = 'output window, operand 0, single buffered']
    %9 = vsyncpa [#allocation3], 0
    %10 = vsyncpa [#allocation6], 0
    %11 = vsyncpa [#allocation4], 0
    // Predicated region
    $region2: #{tpu_custom_call.1} parent=1 // pred_check
      _
    $region3: #{tpu_custom_call.1} parent=1 // pred_check_branch
      %13 = sbr.rel (0) target = $region5
    $region4: #{tpu_custom_call.1} parent=1 // pred_region
      %s15 = ssub.s32 128, 128
      %16 = vsyncadd [#allocation3], %s15
      %s18 = sshll.u32 [#allocation2], 4
      %s19 = int_to_ptr.vmem [resolvable:$true] %s18
      %21 = dma.hbm_to_vmem [thread:$0]  %s0, 128, %s19, [#allocation3]
    $region5: #{tpu_custom_call.1} parent=1 // pred_fallthru
      _
    // Predicated region
    $region6: #{tpu_custom_call.1} parent=1 // pred_check
      _
    $region7: #{tpu_custom_call.1} parent=1 // pred_check_branch
      %23 = sbr.rel (0) target = $region9
    $region8: #{tpu_custom_call.1} parent=1 // pred_region
      %s25 = ssub.s32 512, 512
      %26 = vsyncadd [#allocation6], %s25
      %s27 = sshll.u32 [#allocation5], 4
      %s28 = int_to_ptr.vmem [resolvable:$true] %s27
      %33 = dma.hbm_to_vmem [thread:$0]  %s1, 512, %s28, [#allocation6], 128, 128, 8
    $region9: #{tpu_custom_call.1} parent=1 // pred_fallthru
      _
    // Predicated region
    $region10: #{tpu_custom_call.1} parent=1 // pred_check
      _
    $region11: #{tpu_custom_call.1} parent=1 // pred_check_branch
      %35 = sbr.rel (0) target = $region13
    $region12: #{tpu_custom_call.1} parent=1 // pred_region
      _
    $region13: #{tpu_custom_call.1} parent=1 // pred_fallthru
      _
    // Predicated region
    $region14: #{tpu_custom_call.1} parent=1 // pred_check
      _
    $region15: #{tpu_custom_call.1} parent=1 // pred_check_branch
      %37 = sbr.rel (0) target = $region17
    $region16: #{tpu_custom_call.1} parent=1 // pred_region
      _
    $region17: #{tpu_custom_call.1} parent=1 // pred_fallthru
      _
    // Predicated region
    $region18: #{tpu_custom_call.1} parent=1 // pred_check
      _
    $region19: #{tpu_custom_call.1} parent=1 // pred_check_branch
      %39 = sbr.rel (0) target = $region21
    $region20: #{tpu_custom_call.1} parent=1 // pred_region
      %40 = dma.done [#allocation3], 128
    $region21: #{tpu_custom_call.1} parent=1 // pred_fallthru
      _
    // Predicated region
    $region22: #{tpu_custom_call.1} parent=1 // pred_check
      _
    $region23: #{tpu_custom_call.1} parent=1 // pred_check_branch
      %42 = sbr.rel (0) target = $region25
    $region24: #{tpu_custom_call.1} parent=1 // pred_region
      %43 = dma.done [#allocation6], 512
    $region25: #{tpu_custom_call.1} parent=1 // pred_fallthru
      _
    %v44 = vld [vmem:[#allocation2] sm:$0xff]
    %v45 = vld [vmem:[#allocation5] sm:$0xff]
    %v46 = vld [vmem:[#allocation5 + $0x8] sm:$0xff]
    %v47 = vld [vmem:[#allocation5 + $0x10] sm:$0xff]
    %v48 = vld [vmem:[#allocation5 + $0x18] sm:$0xff]
    %vm49 = vcmask 261120
    %v51 = vsel %vm49, %v44, 0
    %53 = vmatprep.subr.mxu0 0.0
    %54 = vmatpush1.msra.mxu0 0.0
    %55 = vmatprep.subr.mxu0 0.0
    %56 = vmatpush1.msra.mxu0 0.0
    %57 = vmatprep.subr.mxu0 0.0
    %58 = vmatpush1.msra.mxu0 0.0
    %59 = vmatprep.subr.mxu0 0.0
    %60 = vmatpush1.msra.mxu0 0.0
    %61 = vmatprep.subr.mxu0 0.0
    %62 = vmatpush1.msra.mxu0 0.0
    %63 = vmatprep.subr.mxu0 0.0
    %64 = vmatpush1.msra.mxu0 0.0
    %65 = vmatprep.subr.mxu0 0.0
    %66 = vmatpush1.msra.mxu0 0.0
    %67 = vmatprep.subr.mxu0 0.0
    %68 = vmatpush1.msra.mxu0 0.0
    %69 = vmatprep.subr.mxu0 0.0
    %70 = vmatpush1.msra.mxu0 0.0
    %71 = vmatprep.subr.mxu0 0.0
    %72 = vmatpush1.msra.mxu0 0.0
    %73 = vmatprep.subr.mxu0 0.0
    %74 = vmatpush1.msra.mxu0 0.0
    %75 = vmatprep.subr.mxu0 0.0
    %76 = vmatpush1.msra.mxu0 0.0
    %77 = vmatprep.subr.mxu0 0.0
    %78 = vmatpush1.msra.mxu0 %v48
    %79 = vmatprep.subr.mxu0 0.0
    %80 = vmatpush1.msra.mxu0 %v47
    %81 = vmatprep.subr.mxu0 0.0
    %82 = vmatpush1.msra.mxu0 %v46
    %83 = vmatprep.subr.mxu0 0.0
    %84 = vmatpush1.msra.mxu0 %v45
    %85 = vmatprep.subr.mxu0 0.0
    %86 = vmatpush2.msra.mxu0 0.0
    %87 = vmatprep.subr.mxu0 0.0
    %88 = vmatpush2.msra.mxu0 0.0
    %89 = vmatprep.subr.mxu0 0.0
    %90 = vmatpush2.msra.mxu0 0.0
    %91 = vmatprep.subr.mxu0 0.0
    %92 = vmatpush2.msra.mxu0 0.0
    %93 = vmatprep.subr.mxu0 0.0
    %94 = vmatpush2.msra.mxu0 0.0
    %95 = vmatprep.subr.mxu0 0.0
    %96 = vmatpush2.msra.mxu0 0.0
    %97 = vmatprep.subr.mxu0 0.0
    %98 = vmatpush2.msra.mxu0 0.0
    %99 = vmatprep.subr.mxu0 0.0
    %100 = vmatpush2.msra.mxu0 0.0
    %101 = vmatprep.subr.mxu0 0.0
    %102 = vmatpush2.msra.mxu0 0.0
    %103 = vmatprep.subr.mxu0 0.0
    %104 = vmatpush2.msra.mxu0 0.0
    %105 = vmatprep.subr.mxu0 0.0
    %106 = vmatpush2.msra.mxu0 0.0
    %107 = vmatprep.subr.mxu0 0.0
    %108 = vmatpush2.msra.mxu0 0.0
    %109 = vmatprep.subr.mxu0 0.0
    %110 = vmatpush2.msra.mxu0 0.0
    %111 = vmatprep.subr.mxu0 0.0
    %112 = vmatpush2.msra.mxu0 0.0
    %113 = vmatprep.subr.mxu0 0.0
    %114 = vmatpush2.msra.mxu0 0.0
    %115 = vmatprep.subr.mxu0 0.0
    %116 = vmatpush2.msra.mxu0 0.0
    %117 = vmatprep.mubr.f32.mxu0 0.0
    %118 = vmatmul.mubr.f32.gmra.mxu0 %v51
    %v119 = vpop.f32.mrf.mxu0
    %v120 = vadd.f32 0.0, %v119
    %v121 = vpop.f32.mrf.mxu0
    %122 = vdwg.mxu0
    %v123 = vsel %vm49, %v120, 0.0
    %v124 = vrot.slane %v123, 4
    %v125 = vadd.f32 %v123, %v124
    %v126 = vrot.slane %v125, 2
    %v127 = vadd.f32 %v125, %v126
    %v128 = vrot.slane %v127, 1
    %v129 = vadd.f32 %v127, %v128
    %v130 = vrcp.pop 8.0
    %v131 = vmul.f32 %v129, %v130
    %v132 = vmul.f32 %v120, %v120
    %v133 = vsel %vm49, %v132, 0.0
    %v134 = vrot.slane %v133, 4
    %v135 = vadd.f32 %v133, %v134
    %v136 = vrot.slane %v135, 2
    %v137 = vadd.f32 %v135, %v136
    %v138 = vrot.slane %v137, 1
    %v139 = vadd.f32 %v137, %v138
    %v140 = vmul.f32 %v139, %v130
    %v141 = vmul.f32 %v131, %v131
    %v142 = vsub.f32 %v140, %v141
    %v143 = vmax.f32 %v142, 0.0
    %v144 = vadd.f32 %v143, 1e-05
    %v145 = vrsqrt.pop %v144
    %v146 = vld [vmem:[%s2] sm:$0x1]
    %v147 = vmul.f32 %v145, %v146
    %v148 = vld [vmem:[%s3] sm:$0x1]
    %v149 = vmul.f32 %v131, %v147
    %v150 = vsub.f32 %v148, %v149
    %v151 = vlaneseq
    %v152 = vshrl.u32 %v151, 7
    %v153 = vsub.s32 0, %v152
    %v154 = vrot.slane %v147, %v153
    %v155 = vmul.f32 %v120, %v154
    %v157 = vlaneseq
    %v158 = vshrl.u32 %v157, 7
    %v159 = vsub.s32 0, %v158
    %v160 = vrot.slane %v150, %v159
    %v162 = vadd.f32 %v155, %v160
    %v163 = vmax.f32 %v162, 0.0
    %164 = vst.msk [vmem:[#allocation7] sm:$0xff] %vm49, %v163
    // Predicated region
    $region26: #{tpu_custom_call.1} parent=1 // pred_check
      _
    $region27: #{tpu_custom_call.1} parent=1 // pred_check_branch
      %166 = sbr.rel (0) target = $region29
    $region28: #{tpu_custom_call.1} parent=1 // pred_region
      %s168 = ssub.s32 128, 128
      %169 = vsyncadd [#allocation4], %s168
      %s171 = sshll.u32 [#allocation7], 4
      %s172 = int_to_ptr.vmem [resolvable:$true] %s171
      %174 = dma.vmem_to_hbm [thread:$0]  %s172, 128, %s4, [#allocation4]
    $region29: #{tpu_custom_call.1} parent=1 // pred_fallthru
      _
    // Predicated region
    $region30: #{tpu_custom_call.1} parent=1 // pred_check
      _
    $region31: #{tpu_custom_call.1} parent=1 // pred_check_branch
      %176 = sbr.rel (0) target = $region33
    $region32: #{tpu_custom_call.1} parent=1 // pred_region
      %177 = dma.done [#allocation4], 128
    $region33: #{tpu_custom_call.1} parent=1 // pred_fallthru
      _
    %178 = vsyncpa [#allocation3], 1
    %179 = vsyncpa [#allocation6], 1
    %180 = vsyncpa [#allocation4], 1

</llo_original>
